<compile_context>
chip_gen: v7x
topology: tpu7x:2x2x1
jax: 0.10.0
libtpu: 0.0.40
codegen_flags: <defaults>
</compile_context>

<pallas_src>
import math

import numpy as np
import jax
import jax.numpy as jnp
from jax.experimental import pallas as pl
from jax.experimental.pallas import tpu as pltpu


# ----------------------------------------------------------------------------
# Host-side neighbor sampling (direct numpy port of the PyTorch helpers).
# TODO(synk): data-dependent Python set/list logic; no Pallas equivalent.
# ----------------------------------------------------------------------------
def choose_step_neighs(center_scores, center_labels, neigh_scores, neighs_list,
                       minor_scores, minor_list, sample_list, sample_rate):
    samp_neighs, samp_score_diff = [], []
    for idx in range(len(center_scores)):
        center_score = float(center_scores[idx][0])
        neigh_score = np.asarray(neigh_scores[idx])[:, 0].reshape(-1, 1)
        neighs_indices = neighs_list[idx]
        num_sample = sample_list[idx]
        score_diff_neigh = np.abs(center_score - neigh_score).squeeze()
        sorted_neigh_indices = np.argsort(score_diff_neigh, kind="stable")
        sorted_score_diff_neigh = score_diff_neigh[sorted_neigh_indices]
        selected_neigh_indices = sorted_neigh_indices.tolist()
        if len(neigh_scores[idx]) > num_sample + 1:
            selected_neighs = [int(neighs_indices[n]) for n in selected_neigh_indices[:num_sample]]
            selected_score_diff = sorted_score_diff_neigh.tolist()[:num_sample]
        else:
            selected_neighs = [int(n) for n in neighs_indices]
            selected_score_diff = np.atleast_1d(score_diff_neigh).tolist()
        if int(center_labels[idx]) == 1:
            num_oversample = int(num_sample * sample_rate)
            score_diff_minor = np.abs(
                center_score - np.asarray(minor_scores)[:, 0].reshape(-1, 1)).squeeze()
            sorted_minor_indices = np.argsort(score_diff_minor, kind="stable")
            sorted_score_diff_minor = score_diff_minor[sorted_minor_indices]
            selected_minor_indices = sorted_minor_indices.tolist()
            selected_neighs.extend(
                [int(minor_list[n]) for n in selected_minor_indices[:num_oversample]])
            selected_score_diff.extend(sorted_score_diff_minor.tolist()[:num_oversample])
        samp_neighs.append(set(selected_neighs))
        samp_score_diff.append(selected_score_diff)
    return samp_neighs, samp_score_diff


def choose_step_test(center_scores, neigh_scores, neighs_list, sample_list):
    samp_neighs, samp_scores = [], []
    for idx in range(len(center_scores)):
        center_score = float(center_scores[idx][0])
        neigh_score = np.asarray(neigh_scores[idx])[:, 0].reshape(-1, 1)
        neighs_indices = neighs_list[idx]
        num_sample = sample_list[idx]
        score_diff = np.abs(center_score - neigh_score).squeeze()
        sorted_indices = np.argsort(score_diff, kind="stable")
        sorted_scores = score_diff[sorted_indices]
        selected_indices = sorted_indices.tolist()
        if len(neigh_scores[idx]) > num_sample + 1:
            selected_neighs = [int(neighs_indices[n]) for n in selected_indices[:num_sample]]
            selected_scores = sorted_scores.tolist()[:num_sample]
        else:
            selected_neighs = [int(n) for n in neighs_indices]
            selected_scores = np.atleast_1d(score_diff).tolist()
        samp_neighs.append(set(selected_neighs))
        samp_scores.append(selected_scores)
    return samp_neighs, samp_scores


# ----------------------------------------------------------------------------
# Tiling / padding decisions.
# ----------------------------------------------------------------------------
_VMEM_BUDGET = 40 * 1024 * 1024   # keep double-buffered footprint well under
                                  # v7x's 64 MiB physical / 48 MiB scoped cap.


def _round_up(x, m):
    return ((x + m - 1) // m) * m


def _choose_tiles(B, U, F, E):
    F_pad = _round_up(F, 128)
    E_pad = _round_up(E, 128)

    # Batch tile: 256 rows matches the v6e/v7x 256x256 MXU for big batches;
    # for mid/small batches keep >=2 i-steps where possible so the "parallel"
    # axis feeds both v7x TensorCores; 16-row alignment = bf16 sublane pack.
    if B >= 512:
        TB = 256
    elif B >= 256:
        TB = 128
    elif B >= 32:
        TB = _round_up(_round_up(B, 16) // 2, 16)
    else:
        TB = _round_up(max(B, 1), 16)
    B_pad = _round_up(B, TB)

    U_pad128 = _round_up(max(U, 1), 128)

    def vmem_bytes(tu):
        # double-buffered bf16 input tiles (self, mask, embed, 2 weights, counts)
        dbl = 2 * (2 * (TB * F_pad + TB * tu + tu * F_pad + 2 * F_pad * E_pad)
                   + 4 * TB)
        acc = 4 * TB * F_pad                 # f32 accumulator scratch
        out = 2 * 4 * TB * E_pad             # double-buffered f32 output tile
        return dbl + acc + out

    # Largest U tile that fits the budget: full U (single grid step, minimal
    # ~0.35us/step overhead) when possible, else a power-of-two*128 tile.
    if vmem_bytes(U_pad128) <= _VMEM_BUDGET:
        TU = U_pad128
    else:
        TU = 128
        for cand in (4096, 2048, 1024, 512, 256):
            if vmem_bytes(cand) <= _VMEM_BUDGET:
                TU = cand
                break
    U_pad = _round_up(U_pad128, TU)
    return TB, TU, B_pad, U_pad, F_pad, E_pad


# ----------------------------------------------------------------------------
# Pallas kernel: tiled mask@embed accumulation -> normalize -> linear -> ReLU.
# ----------------------------------------------------------------------------
def _intra_agg_kernel(self_ref, mask_ref, embed_ref, invc_ref, ws_ref, wn_ref,
                      out_ref, acc_ref):
    u = pl.program_id(1)

    @pl.when(u == 0)
    def _init():
        acc_ref[...] = jnp.zeros_like(acc_ref)

    # Raw-mask aggregation on the MXU (mask is 0/1 so bf16 is exact; f32 acc).
    acc_ref[...] += jnp.dot(mask_ref[...], embed_ref[...],
                            preferred_element_type=jnp.float32)

    @pl.when(u == pl.num_programs(1) - 1)
    def _finalize():
        # Normalize AFTER the matmul with an exact host-precomputed 1/count.
        # (Zero-neighbor rows arrive with inv_count = 0 -> agg = 0; the PyTorch
        #  reference would divide by zero, but such rows are unreachable.)
        agg = (acc_ref[...] * invc_ref[...]).astype(jnp.bfloat16)   # [TB, F_pad]
        out = jnp.dot(self_ref[...], ws_ref[...], preferred_element_type=jnp.float32)
        out = out + jnp.dot(agg, wn_ref[...], preferred_element_type=jnp.float32)
        out_ref[...] = jnp.maximum(out, 0.0).astype(out_ref.dtype)


def intra_agg_pallas(self_p, mask_p, embed_p, invc_p, w_self_p, w_neigh_p, *, TB, TU):
    """relu(self_p @ W_self + ((mask_p @ embed_p) * invc_p) @ W_neigh), padded."""
    B_pad, F_pad = self_p.shape
    U_pad = mask_p.shape[1]
    E_pad = w_self_p.shape[1]
    grid = (B_pad // TB, U_pad // TU)
    n_i = grid[0]

    cost = pl.CostEstimate(
        flops=2 * B_pad * U_pad * F_pad + 2 * B_pad * (2 * F_pad) * E_pad,
        transcendentals=0,
        bytes_accessed=(2 * B_pad * U_pad                 # mask (bf16)
                        + 2 * n_i * U_pad * F_pad         # embed, re-streamed per i-step
                        + 2 * B_pad * F_pad               # self feats
                        + 2 * 2 * F_pad * E_pad           # weights
                        + 4 * B_pad                       # inverse counts
                        + 4 * B_pad * E_pad))             # f32 output

    return pl.pallas_call(
        _intra_agg_kernel,
        out_shape=jax.ShapeDtypeStruct((B_pad, E_pad), jnp.float32),
        grid_spec=pltpu.PrefetchScalarGridSpec(
            num_scalar_prefetch=0,
            grid=grid,
            in_specs=[
                pl.BlockSpec((TB, F_pad), lambda i, u: (i, 0)),        # self feats
                pl.BlockSpec((TB, TU), lambda i, u: (i, u)),           # mask tile
                pl.BlockSpec((TU, F_pad), lambda i, u: (u, 0)),        # embed tile
                pl.BlockSpec((TB, 1), lambda i, u: (i, 0)),            # 1/neighbor-count
                pl.BlockSpec((F_pad, E_pad), lambda i, u: (0, 0)),     # W_self (resident)
                pl.BlockSpec((F_pad, E_pad), lambda i, u: (0, 0)),     # W_neigh (resident)
            ],
            out_specs=pl.BlockSpec((TB, E_pad), lambda i, u: (i, 0)),
            scratch_shapes=[pltpu.VMEM((TB, F_pad), jnp.float32)]),    # agg accumulator
        compiler_params=pltpu.CompilerParams(
            dimension_semantics=("parallel", "arbitrary"),
            vmem_limit_bytes=48 * 1024 * 1024),
        cost_estimate=cost,
    )(self_p, mask_p, embed_p, invc_p, w_self_p, w_neigh_p)


# ----------------------------------------------------------------------------
# One-time weight preparation (pad + cast once, not per forward call).
# ----------------------------------------------------------------------------
def prepare_intra_agg_weight(weight):
    two_f, E = weight.shape
    F = two_f // 2
    F_pad = _round_up(F, 128)
    E_pad = _round_up(E, 128)
    w_self = jnp.zeros((F_pad, E_pad), jnp.bfloat16).at[:F, :E].set(
        weight[:F, :].astype(jnp.bfloat16))
    w_neigh = jnp.zeros((F_pad, E_pad), jnp.bfloat16).at[:F, :E].set(
        weight[F:, :].astype(jnp.bfloat16))
    return w_self, w_neigh


# ----------------------------------------------------------------------------
# IntraAgg.forward equivalent.
# ----------------------------------------------------------------------------
def intra_agg_forward(features, w_self_p, w_neigh_p, embed_dim, nodes, batch_labels,
                      to_neighs_list, batch_scores, neigh_scores, pos_scores,
                      train_pos, sample_list, rho, train_flag):
    if train_flag:
        samp_neighs, samp_scores = choose_step_neighs(
            batch_scores, batch_labels, neigh_scores, to_neighs_list,
            pos_scores, train_pos, sample_list, rho)
    else:
        samp_neighs, samp_scores = choose_step_test(
            batch_scores, neigh_scores, to_neighs_list, sample_list)

    unique_nodes_list = list(set.union(*samp_neighs))
    unique_nodes = {n: i for i, n in enumerate(unique_nodes_list)}
    B, U = len(samp_neighs), len(unique_nodes_list)
    F = features.shape[1]
    E = embed_dim

    TB, TU, B_pad, U_pad, F_pad, E_pad = _choose_tiles(B, U, F, E)

    # Only O(B*k) int32 indices + B exact 1/count floats cross the host boundary;
    # mask scatter and feature gathers run on device, directly into padded bf16.
    row_idx = np.asarray([i for i, sn in enumerate(samp_neighs) for _ in sn], np.int32)
    col_idx = np.asarray([unique_nodes[n] for sn in samp_neighs for n in sn], np.int32)
    nodes_idx = np.zeros((B_pad,), np.int32)
    nodes_idx[:B] = np.asarray(nodes, np.int32)
    unique_idx = np.zeros((U_pad,), np.int32)
    unique_idx[:U] = np.asarray(unique_nodes_list, np.int32)
    inv_cnt = np.zeros((B_pad, 1), np.float32)
    inv_cnt[:B, 0] = np.asarray([1.0 / max(len(sn), 1) for sn in samp_neighs], np.float32)

    self_p = jnp.take(features, jnp.asarray(nodes_idx), axis=0).astype(jnp.bfloat16)
    embed_p = jnp.take(features, jnp.asarray(unique_idx), axis=0).astype(jnp.bfloat16)
    if F != F_pad:   # skip the pad entirely when F is already lane-dense
        self_p = jnp.pad(self_p, ((0, 0), (0, F_pad - F)))
        embed_p = jnp.pad(embed_p, ((0, 0), (0, F_pad - F)))
    mask_p = jnp.zeros((B_pad, U_pad), jnp.bfloat16).at[
        jnp.asarray(row_idx), jnp.asarray(col_idx)].set(1.0)
    invc_p = jnp.asarray(inv_cnt)

    out = intra_agg_pallas(self_p, mask_p, embed_p, invc_p, w_self_p, w_neigh_p,
                           TB=TB, TU=TU)
    return out[:B, :E], samp_scores


if __name__ == "__main__":
    key = jax.random.PRNGKey(0)
    k_feat, k_w, k_score = jax.random.split(key, 3)

    N_total, feat_dim, embed_dim = 64, 32, 32
    B = 8
    rho = 0.5

    # deterministic parameters / inputs
    features = jax.random.normal(k_feat, (N_total, feat_dim), dtype=jnp.float32)
    bound = math.sqrt(6.0 / (2 * feat_dim + embed_dim))            # xavier_uniform_
    weight = jax.random.uniform(k_w, (2 * feat_dim, embed_dim),
                                dtype=jnp.float32, minval=-bound, maxval=bound)
    score_table = np.asarray(jax.random.normal(k_score, (N_total, 2), dtype=jnp.float32))

    rng = np.random.RandomState(0)
    nodes = list(range(B))
    batch_labels = rng.randint(0, 2, size=B).tolist()
    to_neighs_list = [rng.choice(N_total, size=rng.randint(3, 10), replace=False).tolist()
                      for _ in range(B)]
    train_pos = list(range(40, 48))                                # minority class node ids
    sample_list = [4] * B

    batch_scores = score_table[np.asarray(nodes)]
    neigh_scores = [score_table[np.asarray(nl)] for nl in to_neighs_list]
    pos_scores = score_table[np.asarray(train_pos)]

    # pad + cast the weight once (module-init analogue), reused by every call
    w_self_p, w_neigh_p = prepare_intra_agg_weight(weight)

    to_feats, samp_scores = intra_agg_forward(
        features, w_self_p, w_neigh_p, embed_dim, nodes, batch_labels,
        to_neighs_list, batch_scores, neigh_scores, pos_scores, train_pos,
        sample_list, rho, train_flag=True)
    to_feats = jax.block_until_ready(to_feats)

    # pure-f32 reference of the dense path for sanity checking
    samp_neighs_ref, _ = choose_step_neighs(batch_scores, batch_labels, neigh_scores,
                                            to_neighs_list, pos_scores, train_pos,
                                            sample_list, rho)
    unique_nodes_list = list(set.union(*samp_neighs_ref))
    unique_nodes = {n: i for i, n in enumerate(unique_nodes_list)}
    mask_np = np.zeros((len(samp_neighs_ref), len(unique_nodes_list)), np.float32)
    for i, sn in enumerate(samp_neighs_ref):
        for n in sn:
            mask_np[i, unique_nodes[n]] = 1.0
    self_np = np.asarray(features)[np.asarray(nodes)]
    embed_np = np.asarray(features)[np.asarray(unique_nodes_list)]
    m = mask_np / mask_np.sum(1, keepdims=True)
    ref = np.maximum(np.concatenate([self_np, m @ embed_np], 1) @ np.asarray(weight), 0.0)

    assert to_feats.shape == (B, embed_dim)
    # bf16 MXU operands vs. pure-f32 reference -> relaxed tolerance
    assert np.allclose(np.asarray(to_feats), ref, atol=3e-2, rtol=3e-2), \
        float(np.max(np.abs(np.asarray(to_feats) - ref)))

    print("KERNEL_OK")
</pallas_src>

<mosaic_0001>
module attributes {stable_mosaic.version = 11 : i64} {
  func.func @_intra_agg_kernel(%arg0: i32, %arg1: i32, %arg2: memref<16x128xbf16, #tpu.memory_space<vmem>>, %arg3: memref<16x128xbf16, #tpu.memory_space<vmem>>, %arg4: memref<128x128xbf16, #tpu.memory_space<vmem>>, %arg5: memref<16x1xf32, #tpu.memory_space<vmem>>, %arg6: memref<128x128xbf16, #tpu.memory_space<vmem>>, %arg7: memref<128x128xbf16, #tpu.memory_space<vmem>>, %arg8: memref<16x128xf32, #tpu.memory_space<vmem>>, %arg9: memref<16x128xf32, #tpu.memory_space<vmem>>) attributes {dimension_semantics = [#tpu.dimension_semantics<parallel>, #tpu.dimension_semantics<arbitrary>], iteration_bounds = array<i64: 1, 1>, scalar_prefetch = 0 : i64, scratch_operands = 1 : i64, tpu.core_type = #tpu.core_type<tc>, window_params = [{transform_indices = @transform_0, window_bounds = array<i64: 16, 128>}, {transform_indices = @transform_1, window_bounds = array<i64: 16, 128>}, {transform_indices = @transform_2, window_bounds = array<i64: 128, 128>}, {transform_indices = @transform_3, window_bounds = array<i64: 16, 1>}, {pipeline_mode = #tpu.pipeline_mode<synchronous>, transform_indices = @transform_4, window_bounds = array<i64: 128, 128>}, {pipeline_mode = #tpu.pipeline_mode<synchronous>, transform_indices = @transform_5, window_bounds = array<i64: 128, 128>}, {transform_indices = @transform_6, window_bounds = array<i64: 16, 128>}]} {
    %c0_i32 = arith.constant 0 : i32
    %0 = arith.cmpi eq, %arg1, %c0_i32 : i32
    %1 = arith.extui %0 : i1 to i32
    %c0_i32_0 = arith.constant 0 : i32
    %2 = arith.cmpi ne, %1, %c0_i32_0 : i32
    scf.if %2 {
      %cst_10 = arith.constant 0.000000e+00 : f32
      %12 = vector.broadcast %cst_10 : f32 to vector<16x128xf32>
      %c0_11 = arith.constant 0 : index
      %c0_12 = arith.constant 0 : index
      %13 = vector.load %arg9[%c0_11, %c0_12] : memref<16x128xf32, #tpu.memory_space<vmem>>, vector<16x128xf32>
      tpu.vector_store %arg9[%c0_11, %c0_12], %12 {strides = array<i32>} : memref<16x128xf32, #tpu.memory_space<vmem>>, vector<16x128xf32>,
    } else {
    }
    %c0 = arith.constant 0 : index
    %c0_1 = arith.constant 0 : index
    %3 = vector.load %arg9[%c0, %c0_1] : memref<16x128xf32, #tpu.memory_space<vmem>>, vector<16x128xf32>
    %c0_2 = arith.constant 0 : index
    %c0_3 = arith.constant 0 : index
    %4 = vector.load %arg3[%c0_2, %c0_3] : memref<16x128xbf16, #tpu.memory_space<vmem>>, vector<16x128xbf16>
    %c0_4 = arith.constant 0 : index
    %c0_5 = arith.constant 0 : index
    %5 = vector.load %arg4[%c0_4, %c0_5] : memref<128x128xbf16, #tpu.memory_space<vmem>>, vector<128x128xbf16>
    %cst = arith.constant dense<0.000000e+00> : vector<16x128xf32>
    %6 = tpu.matmul %4, %5, %cst {dimension_numbers = #tpu.dot_dimension_numbers<[1], [0], [0], [1], [0, 0, 1, 1], [], []>} : vector<16x128xbf16>, vector<128x128xbf16>, vector<16x128xf32> -> vector<16x128xf32>
    %7 = arith.addf %3, %6 : vector<16x128xf32>
    %c0_6 = arith.constant 0 : index
    %c0_7 = arith.constant 0 : index
    %8 = vector.load %arg9[%c0_6, %c0_7] : memref<16x128xf32, #tpu.memory_space<vmem>>, vector<16x128xf32>
    tpu.vector_store %arg9[%c0_6, %c0_7], %7 {strides = array<i32>} : memref<16x128xf32, #tpu.memory_space<vmem>>, vector<16x128xf32>,
    %c0_i32_8 = arith.constant 0 : i32
    %9 = arith.cmpi eq, %arg1, %c0_i32_8 : i32
    %10 = arith.extui %9 : i1 to i32
    %c0_i32_9 = arith.constant 0 : i32
    %11 = arith.cmpi ne, %10, %c0_i32_9 : i32
    scf.if %11 {
      %c0_10 = arith.constant 0 : index
      %c0_11 = arith.constant 0 : index
      %12 = vector.load %arg9[%c0_10, %c0_11] : memref<16x128xf32, #tpu.memory_space<vmem>>, vector<16x128xf32>
      %c0_12 = arith.constant 0 : index
      %c0_13 = arith.constant 0 : index
      %13 = vector.load %arg5[%c0_12, %c0_13] : memref<16x1xf32, #tpu.memory_space<vmem>>, vector<16x1xf32>
      %14 = vector.broadcast %13 : vector<16x1xf32> to vector<16x128xf32>
      %15 = arith.mulf %12, %14 : vector<16x128xf32>
      %16 = arith.truncf %15 : vector<16x128xf32> to vector<16x128xbf16>
      %c0_14 = arith.constant 0 : index
      %c0_15 = arith.constant 0 : index
      %17 = vector.load %arg2[%c0_14, %c0_15] : memref<16x128xbf16, #tpu.memory_space<vmem>>, vector<16x128xbf16>
      %c0_16 = arith.constant 0 : index
      %c0_17 = arith.constant 0 : index
      %18 = vector.load %arg6[%c0_16, %c0_17] : memref<128x128xbf16, #tpu.memory_space<vmem>>, vector<128x128xbf16>
      %cst_18 = arith.constant dense<0.000000e+00> : vector<16x128xf32>
      %19 = tpu.matmul %17, %18, %cst_18 {dimension_numbers = #tpu.dot_dimension_numbers<[1], [0], [0], [1], [0, 0, 1, 1], [], []>} : vector<16x128xbf16>, vector<128x128xbf16>, vector<16x128xf32> -> vector<16x128xf32>
      %c0_19 = arith.constant 0 : index
      %c0_20 = arith.constant 0 : index
      %20 = vector.load %arg7[%c0_19, %c0_20] : memref<128x128xbf16, #tpu.memory_space<vmem>>, vector<128x128xbf16>
      %cst_21 = arith.constant dense<0.000000e+00> : vector<16x128xf32>
      %21 = tpu.matmul %16, %20, %cst_21 {dimension_numbers = #tpu.dot_dimension_numbers<[1], [0], [0], [1], [0, 0, 1, 1], [], []>} : vector<16x128xbf16>, vector<128x128xbf16>, vector<16x128xf32> -> vector<16x128xf32>
      %22 = arith.addf %19, %21 : vector<16x128xf32>
      %cst_22 = arith.constant 0.000000e+00 : f32
      %23 = vector.broadcast %cst_22 : f32 to vector<16x128xf32>
      %24 = arith.maximumf %22, %23 : vector<16x128xf32>
      %c0_23 = arith.constant 0 : index
      %c0_24 = arith.constant 0 : index
      %25 = vector.load %arg8[%c0_23, %c0_24] : memref<16x128xf32, #tpu.memory_space<vmem>>, vector<16x128xf32>
      tpu.vector_store %arg8[%c0_23, %c0_24], %24 {strides = array<i32>} : memref<16x128xf32, #tpu.memory_space<vmem>>, vector<16x128xf32>,
    } else {
    }
    return
  }
  func.func @transform_0(%arg0: i32, %arg1: i32) -> (i32, i32) {
    %c0_i32 = arith.constant 0 : i32
    %c0_i32_0 = arith.constant 0 : i32
    return %arg0, %c0_i32 : i32, i32
  }
  func.func @transform_1(%arg0: i32, %arg1: i32) -> (i32, i32) {
    %c0_i32 = arith.constant 0 : i32
    return %arg0, %arg1 : i32, i32
  }
  func.func @transform_2(%arg0: i32, %arg1: i32) -> (i32, i32) {
    %c0_i32 = arith.constant 0 : i32
    %c0_i32_0 = arith.constant 0 : i32
    return %arg1, %c0_i32 : i32, i32
  }
  func.func @transform_3(%arg0: i32, %arg1: i32) -> (i32, i32) {
    %c0_i32 = arith.constant 0 : i32
    %c0_i32_0 = arith.constant 0 : i32
    return %arg0, %c0_i32 : i32, i32
  }
  func.func @transform_4(%arg0: i32, %arg1: i32) -> (i32, i32) {
    %c0_i32 = arith.constant 0 : i32
    %c0_i32_0 = arith.constant 0 : i32
    %c0_i32_1 = arith.constant 0 : i32
    return %c0_i32, %c0_i32_0 : i32, i32
  }
  func.func @transform_5(%arg0: i32, %arg1: i32) -> (i32, i32) {
    %c0_i32 = arith.constant 0 : i32
    %c0_i32_0 = arith.constant 0 : i32
    %c0_i32_1 = arith.constant 0 : i32
    return %c0_i32, %c0_i32_0 : i32, i32
  }
  func.func @transform_6(%arg0: i32, %arg1: i32) -> (i32, i32) {
    %c0_i32 = arith.constant 0 : i32
    %c0_i32_0 = arith.constant 0 : i32
    return %arg0, %c0_i32 : i32, i32
  }
}

</mosaic_0001>

<llo_original>
// kernel: tpu_custom_call.1
$region0: #{tpu_custom_call.1}
  #allocation0 [shape = 'u32[]', space=smem, size = 0x4, offset = 0x4, fixed_abs, tag = 'smem constant byte address 0x4 - core index']
  #allocation1 [shape = 'u32[144,128]{1,0:T(1,128)}', space=vmem, size = 0x12000, scoped, tag = 'internal scratch']
  #allocation2 [shape = 'f32[16,128]{1,0:T(8,128)}', space=vmem, size = 0x2000, scoped, tag = 'scratch operand']
  %s0 = inlined_call_operand.vmem [shape: bf16[16,128], index: 0, kind: input, shape index: {}]
  %s1 = inlined_call_operand.vmem [shape: bf16[16,128], index: 1, kind: input, shape index: {}]
  %s2 = inlined_call_operand.hbm [shape: bf16[128,128], index: 2, kind: input, shape index: {}]
  %s3 = inlined_call_operand.vmem [shape: f32[16,1], index: 3, kind: input, shape index: {}]
  %s4 = inlined_call_operand.hbm [shape: bf16[128,128], index: 4, kind: input, shape index: {}]
  %s5 = inlined_call_operand.hbm [shape: bf16[128,128], index: 5, kind: input, shape index: {}]
  %s6 = inlined_call_operand.hbm [shape: f32[16,128], index: 6, kind: output, shape index: {}]
  %s7 = sld [smem:[#allocation0]]
  $region54: #{tpu_custom_call.1} parent=0
    _
  %s9 = ssub.s32 1, %s7
  %s10 = scalar_select 0, %s9, %s7
  $region1: #{tpu_custom_call.1} parent=0
    #allocation3 [shape = 'u8[32768]{0}', space=vmem, size = 0x8000, scoped, tag = 'input window, operand 2, single buffered']
    #allocation4 [shape = 's32[1]{0}', space=sflag, size = 0x4, scoped, tag = 'scoped memory for tpu_custom_call.1']
    #allocation5 [shape = 's32[1]{0}', space=sflag, size = 0x4, scoped, tag = 'scoped memory for tpu_custom_call.1']
    #allocation6 [shape = 'u8[32768]{0}', space=vmem, size = 0x8000, scoped, tag = 'input window, operand 4, single buffered']
    #allocation7 [shape = 's32[1]{0}', space=sflag, size = 0x4, scoped, tag = 'scoped memory for tpu_custom_call.1']
    #allocation8 [shape = 'u8[32768]{0}', space=vmem, size = 0x8000, scoped, tag = 'input window, operand 5, single buffered']
    #allocation9 [shape = 'u8[8192]{0}', space=vmem, size = 0x2000, scoped, tag = 'output window, operand 0, single buffered']
    %11 = vsyncpa [#allocation4], 0
    %12 = vsyncpa [#allocation7], 0
    %13 = vsyncpa [#allocation5], 0
    // Predicated region
    $region2: #{tpu_custom_call.1} parent=1 // pred_check
      _
    $region3: #{tpu_custom_call.1} parent=1 // pred_check_branch
      %15 = sbr.rel (0) target = $region5
    $region4: #{tpu_custom_call.1} parent=1 // pred_region
      _
    $region5: #{tpu_custom_call.1} parent=1 // pred_fallthru
      _
    // Predicated region
    $region6: #{tpu_custom_call.1} parent=1 // pred_check
      _
    $region7: #{tpu_custom_call.1} parent=1 // pred_check_branch
      %17 = sbr.rel (0) target = $region9
    $region8: #{tpu_custom_call.1} parent=1 // pred_region
      _
    $region9: #{tpu_custom_call.1} parent=1 // pred_fallthru
      _
    // Predicated region
    $region10: #{tpu_custom_call.1} parent=1 // pred_check
      _
    $region11: #{tpu_custom_call.1} parent=1 // pred_check_branch
      %19 = sbr.rel (0) target = $region13
    $region12: #{tpu_custom_call.1} parent=1 // pred_region
      %s21 = ssub.s32 1024, 1024
      %22 = vsyncadd [#allocation4], %s21
      %s23 = sshll.u32 [#allocation3], 4
      %s24 = int_to_ptr.vmem [resolvable:$true] %s23
      %29 = dma.hbm_to_vmem [thread:$0]  %s2, 1024, %s24, [#allocation4], 64, 64, 4
    $region13: #{tpu_custom_call.1} parent=1 // pred_fallthru
      _
    // Predicated region
    $region14: #{tpu_custom_call.1} parent=1 // pred_check
      _
    $region15: #{tpu_custom_call.1} parent=1 // pred_check_branch
      %31 = sbr.rel (0) target = $region17
    $region16: #{tpu_custom_call.1} parent=1 // pred_region
      _
    $region17: #{tpu_custom_call.1} parent=1 // pred_fallthru
      _
    // Predicated region
    $region18: #{tpu_custom_call.1} parent=1 // pred_check
      _
    $region19: #{tpu_custom_call.1} parent=1 // pred_check_branch
      %33 = sbr.rel (0) target = $region21
    $region20: #{tpu_custom_call.1} parent=1 // pred_region
      %s35 = ssub.s32 1024, 1024
      %36 = vsyncadd [#allocation7], %s35
      %s37 = sshll.u32 [#allocation6], 4
      %s38 = int_to_ptr.vmem [resolvable:$true] %s37
      %43 = dma.hbm_to_vmem [thread:$0]  %s4, 1024, %s38, [#allocation7], 64, 64, 4
    $region21: #{tpu_custom_call.1} parent=1 // pred_fallthru
      _
    // Predicated region
    $region22: #{tpu_custom_call.1} parent=1 // pred_check
      _
    $region23: #{tpu_custom_call.1} parent=1 // pred_check_branch
      %45 = sbr.rel (0) target = $region25
    $region24: #{tpu_custom_call.1} parent=1 // pred_region
      %s47 = ssub.s32 1024, 1024
      %48 = vsyncadd [#allocation7], %s47
      %s49 = sshll.u32 [#allocation8], 4
      %s50 = int_to_ptr.vmem [resolvable:$true] %s49
      %55 = dma.hbm_to_vmem [thread:$0]  %s5, 1024, %s50, [#allocation7], 64, 64, 4
    $region25: #{tpu_custom_call.1} parent=1 // pred_fallthru
      _
    // Predicated region
    $region26: #{tpu_custom_call.1} parent=1 // pred_check
      _
    $region27: #{tpu_custom_call.1} parent=1 // pred_check_branch
      %57 = sbr.rel (0) target = $region29
    $region28: #{tpu_custom_call.1} parent=1 // pred_region
      %58 = dma.done [#allocation4], 1024
    $region29: #{tpu_custom_call.1} parent=1 // pred_fallthru
      _
    // Predicated region
    $region30: #{tpu_custom_call.1} parent=1 // pred_check
      _
    $region31: #{tpu_custom_call.1} parent=1 // pred_check_branch
      %60 = sbr.rel (0) target = $region33
    $region32: #{tpu_custom_call.1} parent=1 // pred_region
      %61 = dma.done [#allocation7], 1024
    $region33: #{tpu_custom_call.1} parent=1 // pred_fallthru
      _
    // Predicated region
    $region34: #{tpu_custom_call.1} parent=1 // pred_check
      _
    $region35: #{tpu_custom_call.1} parent=1 // pred_check_branch
      %63 = sbr.rel (0) target = $region37
    $region36: #{tpu_custom_call.1} parent=1 // pred_region
      %64 = dma.done [#allocation7], 1024
    $region37: #{tpu_custom_call.1} parent=1 // pred_fallthru
      _
    %p66 = scmp.eq.s32.totalorder 0, 0
    // Predicated region
    $region38: #{tpu_custom_call.1} parent=1 // pred_check
      %p67 = pneg %p66
    $region39: #{tpu_custom_call.1} parent=1 // pred_check_branch
      %69 = sbr.rel (%p67) target = $region41
    $region40: #{tpu_custom_call.1} parent=1 // pred_region
      %70 = vst [vmem:[#allocation2] sm:$0xff] 0.0
      %71 = vst [vmem:[#allocation2 + $0x8] sm:$0xff] 0.0
    $region41: #{tpu_custom_call.1} parent=1 // pred_fallthru
      _
    %v72 = vld [vmem:[#allocation2] sm:$0xff]
    %v73 = vld [vmem:[#allocation2 + $0x8] sm:$0xff]
    %v74 = vld [vmem:[%s1] sm:$0xf]
    %v75 = vld [vmem:[%s1 + $0x4] sm:$0xf]
    %v76 = vld [vmem:[#allocation3] sm:$0xf]
    %v77 = vld [vmem:[#allocation3 + $0x4] sm:$0xf]
    %v78 = vld [vmem:[#allocation3 + $0x8] sm:$0xf]
    %v79 = vld [vmem:[#allocation3 + $0xc] sm:$0xf]
    %v80 = vld [vmem:[#allocation3 + $0x10] sm:$0xf]
    %v81 = vld [vmem:[#allocation3 + $0x14] sm:$0xf]
    %v82 = vld [vmem:[#allocation3 + $0x18] sm:$0xf]
    %v83 = vld [vmem:[#allocation3 + $0x1c] sm:$0xf]
    %v84 = vld [vmem:[#allocation3 + $0x20] sm:$0xf]
    %v85 = vld [vmem:[#allocation3 + $0x24] sm:$0xf]
    %v86 = vld [vmem:[#allocation3 + $0x28] sm:$0xf]
    %v87 = vld [vmem:[#allocation3 + $0x2c] sm:$0xf]
    %v88 = vld [vmem:[#allocation3 + $0x30] sm:$0xf]
    %v89 = vld [vmem:[#allocation3 + $0x34] sm:$0xf]
    %v90 = vld [vmem:[#allocation3 + $0x38] sm:$0xf]
    %v91 = vld [vmem:[#allocation3 + $0x3c] sm:$0xf]
    %v94 = vunpack.c.l.b16 %v74
    %v95 = vunpack.c.l.b16 %v75
    %v96 = vpack.c.b16 %v95, %v94
    %v114 = vunpack.c.l.b16 %v76
    %v115 = vunpack.c.l.b16 %v77
    %v116 = vunpack.c.l.b16 %v78
    %v117 = vunpack.c.l.b16 %v79
    %v118 = vunpack.c.l.b16 %v80
    %v119 = vunpack.c.l.b16 %v81
    %v120 = vunpack.c.l.b16 %v82
    %v121 = vunpack.c.l.b16 %v83
    %v122 = vunpack.c.l.b16 %v84
    %v123 = vunpack.c.l.b16 %v85
    %v124 = vunpack.c.l.b16 %v86
    %v125 = vunpack.c.l.b16 %v87
    %v126 = vunpack.c.l.b16 %v88
    %v127 = vunpack.c.l.b16 %v89
    %v128 = vunpack.c.l.b16 %v90
    %v129 = vunpack.c.l.b16 %v91
    %v130 = vpack.c.b16 %v115, %v114
    %v131 = vpack.c.b16 %v117, %v116
    %v132 = vpack.c.b16 %v119, %v118
    %v133 = vpack.c.b16 %v121, %v120
    %v134 = vpack.c.b16 %v123, %v122
    %v135 = vpack.c.b16 %v125, %v124
    %v136 = vpack.c.b16 %v127, %v126
    %v137 = vpack.c.b16 %v129, %v128
    %146 = vmatprep.subr.bf16.mxu0 0
    %147 = vmatpush1.bf16.msra.mxu0 %v130
    %148 = vmatprep.subr.bf16.mxu0 0
    %149 = vmatpush1.bf16.msra.mxu0 %v131
    %150 = vmatprep.subr.bf16.mxu0 0
    %151 = vmatpush1.bf16.msra.mxu0 %v132
    %152 = vmatprep.subr.bf16.mxu0 0
    %153 = vmatpush1.bf16.msra.mxu0 %v133
    %154 = vmatprep.subr.bf16.mxu0 0
    %155 = vmatpush1.bf16.msra.mxu0 %v134
    %156 = vmatprep.subr.bf16.mxu0 0
    %157 = vmatpush1.bf16.msra.mxu0 %v135
    %158 = vmatprep.subr.bf16.mxu0 0
    %159 = vmatpush1.bf16.msra.mxu0 %v136
    %160 = vmatprep.subr.bf16.mxu0 0
    %161 = vmatpush1.bf16.msra.mxu0 %v137
    %162 = vmatprep.subr.bf16.mxu0 0
    %163 = vmatpush1.bf16.msra.mxu0 0
    %164 = vmatprep.subr.bf16.mxu0 0
    %165 = vmatpush1.bf16.msra.mxu0 0
    %166 = vmatprep.subr.bf16.mxu0 0
    %167 = vmatpush1.bf16.msra.mxu0 0
    %168 = vmatprep.subr.bf16.mxu0 0
    %169 = vmatpush1.bf16.msra.mxu0 0
    %170 = vmatprep.subr.bf16.mxu0 0
    %171 = vmatpush1.bf16.msra.mxu0 0
    %172 = vmatprep.subr.bf16.mxu0 0
    %173 = vmatpush1.bf16.msra.mxu0 0
    %174 = vmatprep.subr.bf16.mxu0 0
    %175 = vmatpush1.bf16.msra.mxu0 0
    %176 = vmatprep.subr.bf16.mxu0 0
    %177 = vmatpush1.bf16.msra.mxu0 0
    %178 = vmatprep.mubr.bf16.mxu0 0
    %179 = vmatmul.mubr.bf16.gmra.mrb[0].mxu0 %v96
    %v180 = vpop.f32.mrb[0].mxu0
    %v181 = vadd.f32 0.0, %v180
    %v182 = vpop.f32.mrb[0].mxu0
    %v183 = vpop.f32.mrb[0].mxu0
    %v184 = vadd.f32 0.0, %v183
    %v185 = vpop.f32.mrb[0].mxu0
    %186 = vdwg.mxu0
    %v187 = vadd.f32 %v72, %v181
    %v188 = vadd.f32 %v73, %v184
    %189 = vst [vmem:[#allocation2] sm:$0xff] %v187
    %190 = vst [vmem:[#allocation2 + $0x8] sm:$0xff] %v188
    // Predicated region
    $region42: #{tpu_custom_call.1} parent=1 // pred_check
      %p191 = pneg %p66
    $region43: #{tpu_custom_call.1} parent=1 // pred_check_branch
      %193 = sbr.rel (%p191) target = $region45
    $region44: #{tpu_custom_call.1} parent=1 // pred_region
      %v194 = vld [vmem:[#allocation2] sm:$0xff]
      %v195 = vld [vmem:[#allocation2 + $0x8] sm:$0xff]
      %v196 = vld [vmem:[%s3] sm:$0xff]
      %v197 = vld [vmem:[%s3 + $0x8] sm:$0xff]
      %199 = vset.pattern.permute.xlu0 0
      %200 = vperm.xlu0 %199, %v196
      %v201 = vpop.permute.xlu0 %200
      %204 = vset.pattern.permute.xlu0 0
      %205 = vperm.xlu0 %204, %v197
      %v206 = vpop.permute.xlu0 %205
      %v208 = vmul.f32 %v194, %v201
      %v209 = vmul.f32 %v195, %v206
      %v210 = vpack.c.bf16 %v209, %v208
      %v211 = vld [vmem:[%s0] sm:$0xf]
      %v212 = vld [vmem:[%s0 + $0x4] sm:$0xf]
      %v213 = vld [vmem:[#allocation6] sm:$0xf]
      %v214 = vld [vmem:[#allocation6 + $0x4] sm:$0xf]
      %v215 = vld [vmem:[#allocation6 + $0x8] sm:$0xf]
      %v216 = vld [vmem:[#allocation6 + $0xc] sm:$0xf]
      %v217 = vld [vmem:[#allocation6 + $0x10] sm:$0xf]
      %v218 = vld [vmem:[#allocation6 + $0x14] sm:$0xf]
      %v219 = vld [vmem:[#allocation6 + $0x18] sm:$0xf]
      %v220 = vld [vmem:[#allocation6 + $0x1c] sm:$0xf]
      %v221 = vld [vmem:[#allocation6 + $0x20] sm:$0xf]
      %v222 = vld [vmem:[#allocation6 + $0x24] sm:$0xf]
      %v223 = vld [vmem:[#allocation6 + $0x28] sm:$0xf]
      %v224 = vld [vmem:[#allocation6 + $0x2c] sm:$0xf]
      %v225 = vld [vmem:[#allocation6 + $0x30] sm:$0xf]
      %v226 = vld [vmem:[#allocation6 + $0x34] sm:$0xf]
      %v227 = vld [vmem:[#allocation6 + $0x38] sm:$0xf]
      %v228 = vld [vmem:[#allocation6 + $0x3c] sm:$0xf]
      %v229 = vld [vmem:[#allocation8] sm:$0xf]
      %v230 = vld [vmem:[#allocation8 + $0x4] sm:$0xf]
      %v231 = vld [vmem:[#allocation8 + $0x8] sm:$0xf]
      %v232 = vld [vmem:[#allocation8 + $0xc] sm:$0xf]
      %v233 = vld [vmem:[#allocation8 + $0x10] sm:$0xf]
      %v234 = vld [vmem:[#allocation8 + $0x14] sm:$0xf]
      %v235 = vld [vmem:[#allocation8 + $0x18] sm:$0xf]
      %v236 = vld [vmem:[#allocation8 + $0x1c] sm:$0xf]
      %v237 = vld [vmem:[#allocation8 + $0x20] sm:$0xf]
      %v238 = vld [vmem:[#allocation8 + $0x24] sm:$0xf]
      %v239 = vld [vmem:[#allocation8 + $0x28] sm:$0xf]
      %v240 = vld [vmem:[#allocation8 + $0x2c] sm:$0xf]
      %v241 = vld [vmem:[#allocation8 + $0x30] sm:$0xf]
      %v242 = vld [vmem:[#allocation8 + $0x34] sm:$0xf]
      %v243 = vld [vmem:[#allocation8 + $0x38] sm:$0xf]
      %v244 = vld [vmem:[#allocation8 + $0x3c] sm:$0xf]
      %v261 = vunpack.c.l.b16 %v229
      %v262 = vunpack.c.l.b16 %v230
      %v263 = vunpack.c.l.b16 %v231
      %v264 = vunpack.c.l.b16 %v232
      %v265 = vunpack.c.l.b16 %v233
      %v266 = vunpack.c.l.b16 %v234
      %v267 = vunpack.c.l.b16 %v235
      %v268 = vunpack.c.l.b16 %v236
      %v269 = vunpack.c.l.b16 %v237
      %v270 = vunpack.c.l.b16 %v238
      %v271 = vunpack.c.l.b16 %v239
      %v272 = vunpack.c.l.b16 %v240
      %v273 = vunpack.c.l.b16 %v241
      %v274 = vunpack.c.l.b16 %v242
      %v275 = vunpack.c.l.b16 %v243
      %v276 = vunpack.c.l.b16 %v244
      %v277 = vpack.c.b16 %v262, %v261
      %v278 = vpack.c.b16 %v264, %v263
      %v279 = vpack.c.b16 %v266, %v265
      %v280 = vpack.c.b16 %v268, %v267
      %v281 = vpack.c.b16 %v270, %v269
      %v282 = vpack.c.b16 %v272, %v271
      %v283 = vpack.c.b16 %v274, %v273
      %v284 = vpack.c.b16 %v276, %v275
      %293 = vmatprep.subr.bf16.mxu0 0
      %294 = vmatpush1.bf16.msra.mxu0 %v277
      %295 = vmatprep.subr.bf16.mxu0 0
      %296 = vmatpush1.bf16.msra.mxu0 %v278
      %297 = vmatprep.subr.bf16.mxu0 0
      %298 = vmatpush1.bf16.msra.mxu0 %v279
      %299 = vmatprep.subr.bf16.mxu0 0
      %300 = vmatpush1.bf16.msra.mxu0 %v280
      %301 = vmatprep.subr.bf16.mxu0 0
      %302 = vmatpush1.bf16.msra.mxu0 %v281
      %303 = vmatprep.subr.bf16.mxu0 0
      %304 = vmatpush1.bf16.msra.mxu0 %v282
      %305 = vmatprep.subr.bf16.mxu0 0
      %306 = vmatpush1.bf16.msra.mxu0 %v283
      %307 = vmatprep.subr.bf16.mxu0 0
      %308 = vmatpush1.bf16.msra.mxu0 %v284
      %309 = vmatprep.subr.bf16.mxu0 0
      %310 = vmatpush1.bf16.msra.mxu0 0
      %311 = vmatprep.subr.bf16.mxu0 0
      %312 = vmatpush1.bf16.msra.mxu0 0
      %313 = vmatprep.subr.bf16.mxu0 0
      %314 = vmatpush1.bf16.msra.mxu0 0
      %315 = vmatprep.subr.bf16.mxu0 0
      %316 = vmatpush1.bf16.msra.mxu0 0
      %317 = vmatprep.subr.bf16.mxu0 0
      %318 = vmatpush1.bf16.msra.mxu0 0
      %319 = vmatprep.subr.bf16.mxu0 0
      %320 = vmatpush1.bf16.msra.mxu0 0
      %321 = vmatprep.subr.bf16.mxu0 0
      %322 = vmatpush1.bf16.msra.mxu0 0
      %323 = vmatprep.subr.bf16.mxu0 0
      %324 = vmatpush1.bf16.msra.mxu0 0
      %325 = vmatprep.mubr.bf16.mxu0 0
      %326 = vmatmul.mubr.bf16.gmra.mrb[0].mxu0 %v210
      %v327 = vpop.f32.mrb[0].mxu0
      %v328 = vadd.f32 0.0, %v327
      %v329 = vpop.f32.mrb[0].mxu0
      %v330 = vpop.f32.mrb[0].mxu0
      %v331 = vadd.f32 0.0, %v330
      %v332 = vpop.f32.mrb[0].mxu0
      %333 = vdwg.mxu0
      %v336 = vunpack.c.l.b16 %v211
      %v337 = vunpack.c.l.b16 %v212
      %v338 = vpack.c.b16 %v337, %v336
      %v356 = vunpack.c.l.b16 %v213
      %v357 = vunpack.c.l.b16 %v214
      %v358 = vunpack.c.l.b16 %v215
      %v359 = vunpack.c.l.b16 %v216
      %v360 = vunpack.c.l.b16 %v217
      %v361 = vunpack.c.l.b16 %v218
      %v362 = vunpack.c.l.b16 %v219
      %v363 = vunpack.c.l.b16 %v220
      %v364 = vunpack.c.l.b16 %v221
      %v365 = vunpack.c.l.b16 %v222
      %v366 = vunpack.c.l.b16 %v223
      %v367 = vunpack.c.l.b16 %v224
      %v368 = vunpack.c.l.b16 %v225
      %v369 = vunpack.c.l.b16 %v226
      %v370 = vunpack.c.l.b16 %v227
      %v371 = vunpack.c.l.b16 %v228
      %v372 = vpack.c.b16 %v357, %v356
      %v373 = vpack.c.b16 %v359, %v358
      %v374 = vpack.c.b16 %v361, %v360
      %v375 = vpack.c.b16 %v363, %v362
      %v376 = vpack.c.b16 %v365, %v364
      %v377 = vpack.c.b16 %v367, %v366
      %v378 = vpack.c.b16 %v369, %v368
      %v379 = vpack.c.b16 %v371, %v370
      %388 = vmatprep.subr.bf16.mxu0 0
      %389 = vmatpush1.bf16.msra.mxu0 %v372
      %390 = vmatprep.subr.bf16.mxu0 0
      %391 = vmatpush1.bf16.msra.mxu0 %v373
      %392 = vmatprep.subr.bf16.mxu0 0
      %393 = vmatpush1.bf16.msra.mxu0 %v374
      %394 = vmatprep.subr.bf16.mxu0 0
      %395 = vmatpush1.bf16.msra.mxu0 %v375
      %396 = vmatprep.subr.bf16.mxu0 0
      %397 = vmatpush1.bf16.msra.mxu0 %v376
      %398 = vmatprep.subr.bf16.mxu0 0
      %399 = vmatpush1.bf16.msra.mxu0 %v377
      %400 = vmatprep.subr.bf16.mxu0 0
      %401 = vmatpush1.bf16.msra.mxu0 %v378
      %402 = vmatprep.subr.bf16.mxu0 0
      %403 = vmatpush1.bf16.msra.mxu0 %v379
      %404 = vmatprep.subr.bf16.mxu0 0
      %405 = vmatpush1.bf16.msra.mxu0 0
      %406 = vmatprep.subr.bf16.mxu0 0
      %407 = vmatpush1.bf16.msra.mxu0 0
      %408 = vmatprep.subr.bf16.mxu0 0
      %409 = vmatpush1.bf16.msra.mxu0 0
      %410 = vmatprep.subr.bf16.mxu0 0
      %411 = vmatpush1.bf16.msra.mxu0 0
      %412 = vmatprep.subr.bf16.mxu0 0
      %413 = vmatpush1.bf16.msra.mxu0 0
      %414 = vmatprep.subr.bf16.mxu0 0
      %415 = vmatpush1.bf16.msra.mxu0 0
      %416 = vmatprep.subr.bf16.mxu0 0
      %417 = vmatpush1.bf16.msra.mxu0 0
      %418 = vmatprep.subr.bf16.mxu0 0
      %419 = vmatpush1.bf16.msra.mxu0 0
      %420 = vmatprep.mubr.bf16.mxu0 0
      %421 = vmatmul.mubr.bf16.gmra.mrb[0].mxu0 %v338
      %v422 = vpop.f32.mrb[0].mxu0
      %v423 = vadd.f32 %v328, %v422
      %v424 = vpop.f32.mrb[0].mxu0
      %v425 = vpop.f32.mrb[0].mxu0
      %v426 = vadd.f32 %v331, %v425
      %v427 = vpop.f32.mrb[0].mxu0
      %428 = vdwg.mxu0
      %v429 = vmax.f32 %v423, 0.0
      %v430 = vmax.f32 %v426, 0.0
      %431 = vst [vmem:[#allocation9] sm:$0xff] %v429
      %432 = vst [vmem:[#allocation9 + $0x8] sm:$0xff] %v430
    $region45: #{tpu_custom_call.1} parent=1 // pred_fallthru
      _
    // Predicated region
    $region46: #{tpu_custom_call.1} parent=1 // pred_check
      _
    $region47: #{tpu_custom_call.1} parent=1 // pred_check_branch
      %434 = sbr.rel (0) target = $region49
    $region48: #{tpu_custom_call.1} parent=1 // pred_region
      %s436 = ssub.s32 256, 256
      %437 = vsyncadd [#allocation5], %s436
      %s438 = sshll.u32 [#allocation9], 4
      %s439 = int_to_ptr.vmem [resolvable:$true] %s438
      %444 = dma.vmem_to_hbm [thread:$0]  %s439, 256, %s6, [#allocation5], 128, 128, 8
    $region49: #{tpu_custom_call.1} parent=1 // pred_fallthru
      _
    // Predicated region
    $region50: #{tpu_custom_call.1} parent=1 // pred_check
      _
    $region51: #{tpu_custom_call.1} parent=1 // pred_check_branch
      %446 = sbr.rel (0) target = $region53
    $region52: #{tpu_custom_call.1} parent=1 // pred_region
      %447 = dma.done [#allocation5], 256
    $region53: #{tpu_custom_call.1} parent=1 // pred_fallthru
      _
    %448 = vsyncpa [#allocation4], 1
    %449 = vsyncpa [#allocation7], 1
    %450 = vsyncpa [#allocation5], 1

</llo_original>
